<compile_context>
chip_gen: v7x
topology: tpu7x:2x2x1
jax: 0.10.0
libtpu: 0.0.40
codegen_flags: <defaults>
</compile_context>

<pallas_src>
import functools
from itertools import combinations

import jax
import jax.numpy as jnp
from jax.experimental import pallas as pl
from jax.experimental.pallas import tpu as pltpu


def _round_up(x, m):
    return ((x + m - 1) // m) * m


# --------------------------------------------------------------------------- #
# Kernel
# --------------------------------------------------------------------------- #
def _bilinear_kernel(x_ref, w_ref, o_ref, *, num_fields, d_embed, fuse_store):
    """One batch tile.

    x_ref: (TILE_B, F*D)  input tile, field-flattened
    w_ref: (D,      P*D)  all per-pair W_p.T concatenated along columns
    o_ref: (TILE_B, P*D)  lane-dense output slab for this batch tile
    """
    F, D = num_fields, d_embed

    # v6e/v7x VALUs are bf16-capable: do the elementwise multiply in bf16 when
    # everything is bf16 (f32 stays only inside the MXU accumulator).
    mul_dtype = jnp.float32
    if o_ref.dtype == jnp.bfloat16 and x_ref.dtype == jnp.bfloat16:
        mul_dtype = jnp.bfloat16

    x = x_ref[...]                       # read the whole tile once
    pieces = []
    off = 0                              # pairs with left field i occupy [off, off+n_j)
    for i in range(F - 1):               # static, unrolled loop over left fields
        n_j = F - 1 - i
        xi = x[:, i * D:(i + 1) * D]                       # (TILE_B, D)
        wt = w_ref[:, off * D:(off + n_j) * D]             # (D, n_j*D)
        xj = x[:, (i + 1) * D:F * D]                       # (TILE_B, n_j*D), contiguous
        y = jnp.dot(xi, wt, preferred_element_type=jnp.float32)
        prod = (y.astype(mul_dtype) * xj.astype(mul_dtype)).astype(o_ref.dtype)
        if fuse_store:
            pieces.append(prod)
        else:
            o_ref[:, off * D:(off + n_j) * D] = prod
        off += n_j

    if fuse_store:
        # Single lane-dense, unmasked full-slab store (avoids masked vst /
        # lane-rotated stores when the per-region offsets off*D are not
        # multiples of 128 lanes, e.g. D=32).
        o_ref[...] = jnp.concatenate(pieces, axis=1)


# --------------------------------------------------------------------------- #
# Wrapper helpers
# --------------------------------------------------------------------------- #
def pack_bilinear_weights(weights):
    """(P, D, D) stack of nn.Linear .weight -> (D, P*D) with column block p
    holding weights[p].T.  Do this ONCE at parameter-init time."""
    P, D, D2 = weights.shape
    assert D == D2
    return jnp.transpose(weights, (2, 0, 1)).reshape(D, P * D)


def _physical_vmem_bytes():
    """Physical VMEM, with a conservative fallback (v7x per-TC = 64 MiB)."""
    try:
        info = pltpu.get_tpu_info()
        return int(getattr(info, "vmem_capacity_bytes", 64 << 20))
    except Exception:
        return 64 << 20


def _pick_tile_b(batch, in_cols, out_cols, itemsize, block_budget_bytes):
    """Largest batch tile whose double-buffered x/out blocks fit the budget,
    capped so the 'parallel' batch grid keeps >= 2 steps (v7x has 2 TCs)."""
    tile = 8
    for cand in (2048, 1024, 512, 256, 128, 64, 32, 16, 8):
        if 2 * cand * (in_cols + out_cols) * itemsize <= block_budget_bytes:
            tile = cand
            break
    tile = min(tile, _round_up(batch, 8))            # don't over-pad tiny batches
    if batch >= 16:                                  # leave >= 2 grid steps
        tile = min(tile, _round_up((batch + 1) // 2, 8))
    return max(tile, 8)


# --------------------------------------------------------------------------- #
# Public forward
# --------------------------------------------------------------------------- #
def bilinear_interaction(x, packed_weights, num_fields, *, out_dtype=None):
    """x: [B, F, D]; packed_weights: [D, P*D] from pack_bilinear_weights().

    Returns [B, P, D] matching BilinearInteraction('field_interaction').forward.
    For ~2x less HBM writeback (the dominant traffic), pass bf16 x /
    packed_weights and out_dtype=jnp.bfloat16 (MXU still accumulates in f32).
    """
    B, F, D = x.shape
    P = F * (F - 1) // 2
    assert F == num_fields
    assert packed_weights.shape == (D, P * D)
    out_dtype = x.dtype if out_dtype is None else out_dtype

    in_cols, out_cols = F * D, P * D
    itemsize = max(jnp.dtype(x.dtype).itemsize, jnp.dtype(out_dtype).itemsize)
    w_bytes = packed_weights.size * jnp.dtype(packed_weights.dtype).itemsize

    # VMEM-budget-aware tiling: ~60% of physical VMEM for the pipelined blocks,
    # reserving room for the (worst-case double-buffered) resident weight slab
    # and compiler scratch.
    phys_vmem = _physical_vmem_bytes()
    block_budget = max(int(phys_vmem * 0.6) - 2 * w_bytes, 2 << 20)
    tile_b = _pick_tile_b(B, in_cols, out_cols, itemsize, block_budget)

    # Pad the batch to a multiple of the tile; padded rows are sliced off below.
    B_pad = _round_up(B, tile_b)
    x_flat = x.reshape(B, in_cols)                    # free reshape, no transpose
    if B_pad != B:
        x_flat = jnp.pad(x_flat, ((0, B_pad - B), (0, 0)))
    grid = (B_pad // tile_b,)

    vmem_limit = int(min(
        max(2 * tile_b * (in_cols + out_cols) * itemsize + 2 * w_bytes + (4 << 20),
            32 << 20),
        int(phys_vmem * 0.9)))

    # Fuse per-field stores into one aligned full-slab store when the region
    # offsets would be lane-misaligned and the slab is small enough to hold.
    fuse_store = (D % 128 != 0) and (out_cols <= 16384)

    def build(single_buffer_weights, fuse):
        kernel = functools.partial(_bilinear_kernel, num_fields=F, d_embed=D,
                                   fuse_store=fuse)
        w_kwargs = {}
        if single_buffer_weights:
            # Constant block index across the grid -> a second pipeline buffer
            # for the weights is pure VMEM waste.
            w_kwargs["pipeline_mode"] = pl.Buffered(1)
        return pl.pallas_call(
            kernel,
            out_shape=jax.ShapeDtypeStruct((B_pad, out_cols), out_dtype),
            grid_spec=pltpu.PrefetchScalarGridSpec(
                num_scalar_prefetch=0,
                grid=grid,
                in_specs=[
                    # one batch tile of x, read once, sliced in-kernel
                    pl.BlockSpec((tile_b, in_cols), lambda b: (b, 0)),
                    # concatenated weights: constant block index -> resident
                    pl.BlockSpec((D, out_cols), lambda b: (0, 0), **w_kwargs),
                ],
                out_specs=pl.BlockSpec((tile_b, out_cols), lambda b: (b, 0)),
            ),
            compiler_params=pltpu.CompilerParams(
                dimension_semantics=("parallel",),
                vmem_limit_bytes=vmem_limit),
        )

    # Try the most optimized configuration first; degrade gracefully so the
    # kernel always runs (older jax may reject pipeline_mode=Buffered(1)).
    attempts = [(True, fuse_store), (False, fuse_store)]
    if fuse_store:
        attempts.append((False, False))
    out_flat = None
    for idx, (sb, fu) in enumerate(attempts):
        try:
            out_flat = build(sb, fu)(x_flat, packed_weights)
            break
        except Exception:
            if idx == len(attempts) - 1:
                raise

    if B_pad != B:
        out_flat = out_flat[:B]
    return out_flat.reshape(B, P, D)                  # free reshape to [B, P, D]


# --------------------------------------------------------------------------- #
# Pure-JAX reference (mirrors the PyTorch forward)
# --------------------------------------------------------------------------- #
def bilinear_interaction_ref(x, weights, num_fields):
    B, F, D = x.shape
    outs = []
    for p, (i, j) in enumerate(combinations(range(F), 2)):
        y = x[:, i, :] @ weights[p].T            # nn.Linear(bias=False)
        outs.append((y * x[:, j, :])[:, None, :])
    return jnp.concatenate(outs, axis=1)


if __name__ == "__main__":
    key = jax.random.PRNGKey(0)

    # Case 1: small even batch.  Case 2: non-dividing batch (exercises padding
    # and the >=2-step "parallel" grid) with odd field count.
    for (B, F, D) in ((8, 4, 32), (20, 5, 16)):
        P = F * (F - 1) // 2
        key, kx, kw = jax.random.split(key, 3)
        x = jax.random.normal(kx, (B, F, D), dtype=jnp.float32)
        # deterministic "nn.Linear.weight"-shaped params, one per field pair
        weights = jax.random.normal(kw, (P, D, D), dtype=jnp.float32) * 0.1

        # One-time weight packing (hoisted out of the hot path).
        w_cat = pack_bilinear_weights(weights)

        out = jax.block_until_ready(bilinear_interaction(x, w_cat, F))
        ref = bilinear_interaction_ref(x, weights, F)
        assert out.shape == (B, P, D), out.shape
        assert jnp.allclose(out, ref, atol=1e-5, rtol=1e-5), "mismatch vs reference"

    print("KERNEL_OK")
</pallas_src>

<mosaic_0001>
module attributes {stable_mosaic.version = 11 : i64} {
  func.func @_bilinear_kernel(%arg0: i32, %arg1: memref<8x128xf32, #tpu.memory_space<vmem>>, %arg2: memref<32x192xf32, #tpu.memory_space<vmem>>, %arg3: memref<8x192xf32, #tpu.memory_space<vmem>>) attributes {dimension_semantics = [#tpu.dimension_semantics<parallel>], iteration_bounds = array<i64: 1>, scalar_prefetch = 0 : i64, scratch_operands = 0 : i64, tpu.core_type = #tpu.core_type<tc>, window_params = [{transform_indices = @transform_0, window_bounds = array<i64: 8, 128>}, {pipeline_mode = #tpu.pipeline_mode<synchronous>, transform_indices = @transform_1, window_bounds = array<i64: 32, 192>}, {transform_indices = @transform_2, window_bounds = array<i64: 8, 192>}]} {
    %c0 = arith.constant 0 : index
    %c0_0 = arith.constant 0 : index
    %0 = vector.load %arg1[%c0, %c0_0] : memref<8x128xf32, #tpu.memory_space<vmem>>, vector<8x128xf32>
    %1 = vector.extract_strided_slice %0 {offsets = [0, 0], sizes = [8, 32], strides = [1, 1]} : vector<8x128xf32> to vector<8x32xf32>
    %c0_1 = arith.constant 0 : index
    %c0_2 = arith.constant 0 : index
    %2 = vector.load %arg2[%c0_1, %c0_2] : memref<32x192xf32, #tpu.memory_space<vmem>>, vector<32x96xf32>
    %3 = vector.extract_strided_slice %0 {offsets = [0, 32], sizes = [8, 96], strides = [1, 1]} : vector<8x128xf32> to vector<8x96xf32>
    %cst = arith.constant dense<0.000000e+00> : vector<8x96xf32>
    %4 = tpu.matmul %1, %2, %cst {dimension_numbers = #tpu.dot_dimension_numbers<[1], [0], [0], [1], [0, 0, 1, 1], [], []>} : vector<8x32xf32>, vector<32x96xf32>, vector<8x96xf32> -> vector<8x96xf32>
    %5 = arith.mulf %4, %3 : vector<8x96xf32>
    %6 = vector.extract_strided_slice %0 {offsets = [0, 32], sizes = [8, 32], strides = [1, 1]} : vector<8x128xf32> to vector<8x32xf32>
    %c0_3 = arith.constant 0 : index
    %c96 = arith.constant 96 : index
    %7 = vector.load %arg2[%c0_3, %c96] : memref<32x192xf32, #tpu.memory_space<vmem>>, vector<32x64xf32>
    %8 = vector.extract_strided_slice %0 {offsets = [0, 64], sizes = [8, 64], strides = [1, 1]} : vector<8x128xf32> to vector<8x64xf32>
    %cst_4 = arith.constant dense<0.000000e+00> : vector<8x64xf32>
    %9 = tpu.matmul %6, %7, %cst_4 {dimension_numbers = #tpu.dot_dimension_numbers<[1], [0], [0], [1], [0, 0, 1, 1], [], []>} : vector<8x32xf32>, vector<32x64xf32>, vector<8x64xf32> -> vector<8x64xf32>
    %10 = arith.mulf %9, %8 : vector<8x64xf32>
    %11 = vector.extract_strided_slice %0 {offsets = [0, 64], sizes = [8, 32], strides = [1, 1]} : vector<8x128xf32> to vector<8x32xf32>
    %c0_5 = arith.constant 0 : index
    %c160 = arith.constant 160 : index
    %12 = vector.load %arg2[%c0_5, %c160] : memref<32x192xf32, #tpu.memory_space<vmem>>, vector<32x32xf32>
    %13 = vector.extract_strided_slice %0 {offsets = [0, 96], sizes = [8, 32], strides = [1, 1]} : vector<8x128xf32> to vector<8x32xf32>
    %cst_6 = arith.constant dense<0.000000e+00> : vector<8x32xf32>
    %14 = tpu.matmul %11, %12, %cst_6 {dimension_numbers = #tpu.dot_dimension_numbers<[1], [0], [0], [1], [0, 0, 1, 1], [], []>} : vector<8x32xf32>, vector<32x32xf32>, vector<8x32xf32> -> vector<8x32xf32>
    %15 = arith.mulf %14, %13 : vector<8x32xf32>
    %16 = tpu.concatenate %5, %10, %15 in 1 : vector<8x96xf32>, vector<8x64xf32>, vector<8x32xf32> -> vector<8x192xf32>
    %c0_7 = arith.constant 0 : index
    %c0_8 = arith.constant 0 : index
    %17 = vector.load %arg3[%c0_7, %c0_8] : memref<8x192xf32, #tpu.memory_space<vmem>>, vector<8x192xf32>
    tpu.vector_store %arg3[%c0_7, %c0_8], %16 {strides = array<i32>} : memref<8x192xf32, #tpu.memory_space<vmem>>, vector<8x192xf32>,
    return
  }
  func.func @transform_0(%arg0: i32) -> (i32, i32) {
    %c0_i32 = arith.constant 0 : i32
    %c0_i32_0 = arith.constant 0 : i32
    return %arg0, %c0_i32 : i32, i32
  }
  func.func @transform_1(%arg0: i32) -> (i32, i32) {
    %c0_i32 = arith.constant 0 : i32
    %c0_i32_0 = arith.constant 0 : i32
    %c0_i32_1 = arith.constant 0 : i32
    return %c0_i32, %c0_i32_0 : i32, i32
  }
  func.func @transform_2(%arg0: i32) -> (i32, i32) {
    %c0_i32 = arith.constant 0 : i32
    %c0_i32_0 = arith.constant 0 : i32
    return %arg0, %c0_i32 : i32, i32
  }
}

module attributes {stable_mosaic.version = 11 : i64} {
  func.func @_bilinear_kernel(%arg0: i32, %arg1: memref<8x128xf32, #tpu.memory_space<vmem>>, %arg2: memref<32x192xf32, #tpu.memory_space<vmem>>, %arg3: memref<8x192xf32, #tpu.memory_space<vmem>>) attributes {dimension_semantics = [#tpu.dimension_semantics<parallel>], iteration_bounds = array<i64: 1>, scalar_prefetch = 0 : i64, scratch_operands = 0 : i64, tpu.core_type = #tpu.core_type<tc>, window_params = [{transform_indices = @transform_0, window_bounds = array<i64: 8, 128>}, {pipeline_mode = #tpu.pipeline_mode<synchronous>, transform_indices = @transform_1, window_bounds = array<i64: 32, 192>}, {transform_indices = @transform_2, window_bounds = array<i64: 8, 192>}]} {
    %c0 = arith.constant 0 : index
    %c0_0 = arith.constant 0 : index
    %0 = vector.load %arg1[%c0, %c0_0] : memref<8x128xf32, #tpu.memory_space<vmem>>, vector<8x128xf32>
    %1 = vector.extract_strided_slice %0 {offsets = [0, 0], sizes = [8, 32], strides = [1, 1]} : vector<8x128xf32> to vector<8x32xf32>
    %c0_1 = arith.constant 0 : index
    %c0_2 = arith.constant 0 : index
    %2 = vector.load %arg2[%c0_1, %c0_2] : memref<32x192xf32, #tpu.memory_space<vmem>>, vector<32x96xf32>
    %3 = vector.extract_strided_slice %0 {offsets = [0, 32], sizes = [8, 96], strides = [1, 1]} : vector<8x128xf32> to vector<8x96xf32>
    %cst = arith.constant dense<0.000000e+00> : vector<8x96xf32>
    %4 = tpu.matmul %1, %2, %cst {dimension_numbers = #tpu.dot_dimension_numbers<[1], [0], [0], [1], [0, 0, 1, 1], [], []>} : vector<8x32xf32>, vector<32x96xf32>, vector<8x96xf32> -> vector<8x96xf32>
    %5 = arith.mulf %4, %3 : vector<8x96xf32>
    %6 = vector.extract_strided_slice %0 {offsets = [0, 32], sizes = [8, 32], strides = [1, 1]} : vector<8x128xf32> to vector<8x32xf32>
    %c0_3 = arith.constant 0 : index
    %c96 = arith.constant 96 : index
    %7 = vector.load %arg2[%c0_3, %c96] : memref<32x192xf32, #tpu.memory_space<vmem>>, vector<32x64xf32>
    %8 = vector.extract_strided_slice %0 {offsets = [0, 64], sizes = [8, 64], strides = [1, 1]} : vector<8x128xf32> to vector<8x64xf32>
    %cst_4 = arith.constant dense<0.000000e+00> : vector<8x64xf32>
    %9 = tpu.matmul %6, %7, %cst_4 {dimension_numbers = #tpu.dot_dimension_numbers<[1], [0], [0], [1], [0, 0, 1, 1], [], []>} : vector<8x32xf32>, vector<32x64xf32>, vector<8x64xf32> -> vector<8x64xf32>
    %10 = arith.mulf %9, %8 : vector<8x64xf32>
    %11 = vector.extract_strided_slice %0 {offsets = [0, 64], sizes = [8, 32], strides = [1, 1]} : vector<8x128xf32> to vector<8x32xf32>
    %c0_5 = arith.constant 0 : index
    %c160 = arith.constant 160 : index
    %12 = vector.load %arg2[%c0_5, %c160] : memref<32x192xf32, #tpu.memory_space<vmem>>, vector<32x32xf32>
    %13 = vector.extract_strided_slice %0 {offsets = [0, 96], sizes = [8, 32], strides = [1, 1]} : vector<8x128xf32> to vector<8x32xf32>
    %cst_6 = arith.constant dense<0.000000e+00> : vector<8x32xf32>
    %14 = tpu.matmul %11, %12, %cst_6 {dimension_numbers = #tpu.dot_dimension_numbers<[1], [0], [0], [1], [0, 0, 1, 1], [], []>} : vector<8x32xf32>, vector<32x32xf32>, vector<8x32xf32> -> vector<8x32xf32>
    %15 = arith.mulf %14, %13 : vector<8x32xf32>
    %16 = tpu.concatenate %5, %10, %15 in 1 : vector<8x96xf32>, vector<8x64xf32>, vector<8x32xf32> -> vector<8x192xf32>
    %c0_7 = arith.constant 0 : index
    %c0_8 = arith.constant 0 : index
    %17 = vector.load %arg3[%c0_7, %c0_8] : memref<8x192xf32, #tpu.memory_space<vmem>>, vector<8x192xf32>
    tpu.vector_store %arg3[%c0_7, %c0_8], %16 {strides = array<i32>} : memref<8x192xf32, #tpu.memory_space<vmem>>, vector<8x192xf32>,
    return
  }
  func.func @transform_0(%arg0: i32) -> (i32, i32) {
    %c0_i32 = arith.constant 0 : i32
    %c0_i32_0 = arith.constant 0 : i32
    return %arg0, %c0_i32 : i32, i32
  }
  func.func @transform_1(%arg0: i32) -> (i32, i32) {
    %c0_i32 = arith.constant 0 : i32
    %c0_i32_0 = arith.constant 0 : i32
    %c0_i32_1 = arith.constant 0 : i32
    return %c0_i32, %c0_i32_0 : i32, i32
  }
  func.func @transform_2(%arg0: i32) -> (i32, i32) {
    %c0_i32 = arith.constant 0 : i32
    %c0_i32_0 = arith.constant 0 : i32
    return %arg0, %c0_i32 : i32, i32
  }
}

module attributes {stable_mosaic.version = 11 : i64} {
  func.func @_bilinear_kernel(%arg0: i32, %arg1: memref<8x128xf32, #tpu.memory_space<vmem>>, %arg2: memref<32x192xf32, #tpu.memory_space<vmem>>, %arg3: memref<8x192xf32, #tpu.memory_space<vmem>>) attributes {dimension_semantics = [#tpu.dimension_semantics<parallel>], iteration_bounds = array<i64: 1>, scalar_prefetch = 0 : i64, scratch_operands = 0 : i64, tpu.core_type = #tpu.core_type<tc>, window_params = [{transform_indices = @transform_0, window_bounds = array<i64: 8, 128>}, {pipeline_mode = #tpu.pipeline_mode<synchronous>, transform_indices = @transform_1, window_bounds = array<i64: 32, 192>}, {transform_indices = @transform_2, window_bounds = array<i64: 8, 192>}]} {
    %c0 = arith.constant 0 : index
    %c0_0 = arith.constant 0 : index
    %0 = vector.load %arg1[%c0, %c0_0] : memref<8x128xf32, #tpu.memory_space<vmem>>, vector<8x128xf32>
    %1 = vector.extract_strided_slice %0 {offsets = [0, 0], sizes = [8, 32], strides = [1, 1]} : vector<8x128xf32> to vector<8x32xf32>
    %c0_1 = arith.constant 0 : index
    %c0_2 = arith.constant 0 : index
    %2 = vector.load %arg2[%c0_1, %c0_2] : memref<32x192xf32, #tpu.memory_space<vmem>>, vector<32x96xf32>
    %3 = vector.extract_strided_slice %0 {offsets = [0, 32], sizes = [8, 96], strides = [1, 1]} : vector<8x128xf32> to vector<8x96xf32>
    %cst = arith.constant dense<0.000000e+00> : vector<8x96xf32>
    %4 = tpu.matmul %1, %2, %cst {dimension_numbers = #tpu.dot_dimension_numbers<[1], [0], [0], [1], [0, 0, 1, 1], [], []>} : vector<8x32xf32>, vector<32x96xf32>, vector<8x96xf32> -> vector<8x96xf32>
    %5 = arith.mulf %4, %3 : vector<8x96xf32>
    %c0_3 = arith.constant 0 : index
    %c0_4 = arith.constant 0 : index
    %6 = vector.load %arg3[%c0_3, %c0_4] : memref<8x192xf32, #tpu.memory_space<vmem>>, vector<8x96xf32>
    tpu.vector_store %arg3[%c0_3, %c0_4], %5 {strides = array<i32>} : memref<8x192xf32, #tpu.memory_space<vmem>>, vector<8x96xf32>,
    %7 = vector.extract_strided_slice %0 {offsets = [0, 32], sizes = [8, 32], strides = [1, 1]} : vector<8x128xf32> to vector<8x32xf32>
    %c0_5 = arith.constant 0 : index
    %c96 = arith.constant 96 : index
    %8 = vector.load %arg2[%c0_5, %c96] : memref<32x192xf32, #tpu.memory_space<vmem>>, vector<32x64xf32>
    %9 = vector.extract_strided_slice %0 {offsets = [0, 64], sizes = [8, 64], strides = [1, 1]} : vector<8x128xf32> to vector<8x64xf32>
    %cst_6 = arith.constant dense<0.000000e+00> : vector<8x64xf32>
    %10 = tpu.matmul %7, %8, %cst_6 {dimension_numbers = #tpu.dot_dimension_numbers<[1], [0], [0], [1], [0, 0, 1, 1], [], []>} : vector<8x32xf32>, vector<32x64xf32>, vector<8x64xf32> -> vector<8x64xf32>
    %11 = arith.mulf %10, %9 : vector<8x64xf32>
    %c0_7 = arith.constant 0 : index
    %c96_8 = arith.constant 96 : index
    %12 = vector.load %arg3[%c0_7, %c96_8] : memref<8x192xf32, #tpu.memory_space<vmem>>, vector<8x64xf32>
    tpu.vector_store %arg3[%c0_7, %c96_8], %11 {strides = array<i32>} : memref<8x192xf32, #tpu.memory_space<vmem>>, vector<8x64xf32>,
    %13 = vector.extract_strided_slice %0 {offsets = [0, 64], sizes = [8, 32], strides = [1, 1]} : vector<8x128xf32> to vector<8x32xf32>
    %c0_9 = arith.constant 0 : index
    %c160 = arith.constant 160 : index
    %14 = vector.load %arg2[%c0_9, %c160] : memref<32x192xf32, #tpu.memory_space<vmem>>, vector<32x32xf32>
    %15 = vector.extract_strided_slice %0 {offsets = [0, 96], sizes = [8, 32], strides = [1, 1]} : vector<8x128xf32> to vector<8x32xf32>
    %cst_10 = arith.constant dense<0.000000e+00> : vector<8x32xf32>
    %16 = tpu.matmul %13, %14, %cst_10 {dimension_numbers = #tpu.dot_dimension_numbers<[1], [0], [0], [1], [0, 0, 1, 1], [], []>} : vector<8x32xf32>, vector<32x32xf32>, vector<8x32xf32> -> vector<8x32xf32>
    %17 = arith.mulf %16, %15 : vector<8x32xf32>
    %c0_11 = arith.constant 0 : index
    %c160_12 = arith.constant 160 : index
    %18 = vector.load %arg3[%c0_11, %c160_12] : memref<8x192xf32, #tpu.memory_space<vmem>>, vector<8x32xf32>
    tpu.vector_store %arg3[%c0_11, %c160_12], %17 {strides = array<i32>} : memref<8x192xf32, #tpu.memory_space<vmem>>, vector<8x32xf32>,
    return
  }
  func.func @transform_0(%arg0: i32) -> (i32, i32) {
    %c0_i32 = arith.constant 0 : i32
    %c0_i32_0 = arith.constant 0 : i32
    return %arg0, %c0_i32 : i32, i32
  }
  func.func @transform_1(%arg0: i32) -> (i32, i32) {
    %c0_i32 = arith.constant 0 : i32
    %c0_i32_0 = arith.constant 0 : i32
    %c0_i32_1 = arith.constant 0 : i32
    return %c0_i32, %c0_i32_0 : i32, i32
  }
  func.func @transform_2(%arg0: i32) -> (i32, i32) {
    %c0_i32 = arith.constant 0 : i32
    %c0_i32_0 = arith.constant 0 : i32
    return %arg0, %c0_i32 : i32, i32
  }
}

</mosaic_0001>

<llo_original>
// kernel: tpu_custom_call.1
$region0: #{tpu_custom_call.1}
  #allocation0 [shape = 'u32[]', space=smem, size = 0x4, offset = 0x4, fixed_abs, tag = 'smem constant byte address 0x4 - core index']
  #allocation1 [shape = 'u32[144,128]{1,0:T(1,128)}', space=vmem, size = 0x12000, scoped, tag = 'internal scratch']
  %s0 = inlined_call_operand.hbm [shape: f32[8,128], index: 0, kind: input, shape index: {}]
  %s1 = inlined_call_operand.hbm [shape: f32[32,192], index: 1, kind: input, shape index: {}]
  %s2 = inlined_call_operand.hbm [shape: f32[8,192], index: 2, kind: output, shape index: {}]
  %s3 = sld [smem:[#allocation0]]
  $region26: #{tpu_custom_call.1} parent=0
    _
  %s5 = ssub.s32 1, %s3
  %s6 = scalar_select 0, %s5, %s3
  $region1: #{tpu_custom_call.1} parent=0
    #allocation2 [shape = 'u8[4096]{0}', space=vmem, size = 0x1000, scoped, tag = 'input window, operand 0, single buffered']
    #allocation3 [shape = 's32[1]{0}', space=sflag, size = 0x4, scoped, tag = 'scoped memory for tpu_custom_call.1']
    #allocation4 [shape = 's32[1]{0}', space=sflag, size = 0x4, scoped, tag = 'scoped memory for tpu_custom_call.1']
    #allocation5 [shape = 'u8[32768]{0}', space=vmem, size = 0x8000, scoped, tag = 'input window, operand 1, single buffered']
    #allocation6 [shape = 's32[1]{0}', space=sflag, size = 0x4, scoped, tag = 'scoped memory for tpu_custom_call.1']
    #allocation7 [shape = 'u8[8192]{0}', space=vmem, size = 0x2000, scoped, tag = 'output window, operand 0, single buffered']
    %7 = vsyncpa [#allocation3], 0
    %8 = vsyncpa [#allocation6], 0
    %9 = vsyncpa [#allocation4], 0
    // Predicated region
    $region2: #{tpu_custom_call.1} parent=1 // pred_check
      _
    $region3: #{tpu_custom_call.1} parent=1 // pred_check_branch
      %11 = sbr.rel (0) target = $region5
    $region4: #{tpu_custom_call.1} parent=1 // pred_region
      %s13 = ssub.s32 128, 128
      %14 = vsyncadd [#allocation3], %s13
      %s16 = sshll.u32 [#allocation2], 4
      %s17 = int_to_ptr.vmem [resolvable:$true] %s16
      %19 = dma.hbm_to_vmem [thread:$0]  %s0, 128, %s17, [#allocation3]
    $region5: #{tpu_custom_call.1} parent=1 // pred_fallthru
      _
    // Predicated region
    $region6: #{tpu_custom_call.1} parent=1 // pred_check
      _
    $region7: #{tpu_custom_call.1} parent=1 // pred_check_branch
      %21 = sbr.rel (0) target = $region9
    $region8: #{tpu_custom_call.1} parent=1 // pred_region
      %s23 = ssub.s32 1024, 1024
      %24 = vsyncadd [#allocation6], %s23
      %s25 = sshll.u32 [#allocation5], 4
      %s26 = int_to_ptr.vmem [resolvable:$true] %s25
      %31 = dma.hbm_to_vmem [thread:$0]  %s1, 1024, %s26, [#allocation6], 256, 256, 16
    $region9: #{tpu_custom_call.1} parent=1 // pred_fallthru
      _
    // Predicated region
    $region10: #{tpu_custom_call.1} parent=1 // pred_check
      _
    $region11: #{tpu_custom_call.1} parent=1 // pred_check_branch
      %33 = sbr.rel (0) target = $region13
    $region12: #{tpu_custom_call.1} parent=1 // pred_region
      %34 = dma.done [#allocation3], 128
    $region13: #{tpu_custom_call.1} parent=1 // pred_fallthru
      _
    // Predicated region
    $region14: #{tpu_custom_call.1} parent=1 // pred_check
      _
    $region15: #{tpu_custom_call.1} parent=1 // pred_check_branch
      %36 = sbr.rel (0) target = $region17
    $region16: #{tpu_custom_call.1} parent=1 // pred_region
      %37 = dma.done [#allocation6], 1024
    $region17: #{tpu_custom_call.1} parent=1 // pred_fallthru
      _
    %v38 = vld [vmem:[#allocation2] sm:$0xff]
    %v39 = vld [vmem:[#allocation5] sm:$0xff]
    %v40 = vld [vmem:[#allocation5 + $0x10] sm:$0xff]
    %v41 = vld [vmem:[#allocation5 + $0x20] sm:$0xff]
    %v42 = vld [vmem:[#allocation5 + $0x30] sm:$0xff]
    %vm43 = vcmask 261120
    %v45 = vsel %vm43, %v38, 0
    %47 = vmatprep.subr.mxu0 0.0
    %48 = vmatpush1.msra.mxu0 %v39
    %49 = vmatprep.subr.mxu0 0.0
    %50 = vmatpush1.msra.mxu0 %v40
    %51 = vmatprep.subr.mxu0 0.0
    %52 = vmatpush1.msra.mxu0 %v41
    %53 = vmatprep.subr.mxu0 0.0
    %54 = vmatpush1.msra.mxu0 %v42
    %55 = vmatprep.subr.mxu0 0.0
    %56 = vmatpush1.msra.mxu0 0.0
    %57 = vmatprep.subr.mxu0 0.0
    %58 = vmatpush1.msra.mxu0 0.0
    %59 = vmatprep.subr.mxu0 0.0
    %60 = vmatpush1.msra.mxu0 0.0
    %61 = vmatprep.subr.mxu0 0.0
    %62 = vmatpush1.msra.mxu0 0.0
    %63 = vmatprep.subr.mxu0 0.0
    %64 = vmatpush1.msra.mxu0 0.0
    %65 = vmatprep.subr.mxu0 0.0
    %66 = vmatpush1.msra.mxu0 0.0
    %67 = vmatprep.subr.mxu0 0.0
    %68 = vmatpush1.msra.mxu0 0.0
    %69 = vmatprep.subr.mxu0 0.0
    %70 = vmatpush1.msra.mxu0 0.0
    %71 = vmatprep.subr.mxu0 0.0
    %72 = vmatpush1.msra.mxu0 0.0
    %73 = vmatprep.subr.mxu0 0.0
    %74 = vmatpush1.msra.mxu0 0.0
    %75 = vmatprep.subr.mxu0 0.0
    %76 = vmatpush1.msra.mxu0 0.0
    %77 = vmatprep.subr.mxu0 0.0
    %78 = vmatpush1.msra.mxu0 0.0
    %79 = vmatprep.subr.mxu0 0.0
    %80 = vmatpush1.msra.mxu0 0.0
    %81 = vmatprep.subr.mxu0 0.0
    %82 = vmatpush1.msra.mxu0 0.0
    %83 = vmatprep.subr.mxu0 0.0
    %84 = vmatpush1.msra.mxu0 0.0
    %85 = vmatprep.subr.mxu0 0.0
    %86 = vmatpush1.msra.mxu0 0.0
    %87 = vmatprep.subr.mxu0 0.0
    %88 = vmatpush1.msra.mxu0 0.0
    %89 = vmatprep.subr.mxu0 0.0
    %90 = vmatpush1.msra.mxu0 0.0
    %91 = vmatprep.subr.mxu0 0.0
    %92 = vmatpush1.msra.mxu0 0.0
    %93 = vmatprep.subr.mxu0 0.0
    %94 = vmatpush1.msra.mxu0 0.0
    %95 = vmatprep.subr.mxu0 0.0
    %96 = vmatpush1.msra.mxu0 0.0
    %97 = vmatprep.subr.mxu0 0.0
    %98 = vmatpush1.msra.mxu0 0.0
    %99 = vmatprep.subr.mxu0 0.0
    %100 = vmatpush1.msra.mxu0 0.0
    %101 = vmatprep.subr.mxu0 0.0
    %102 = vmatpush1.msra.mxu0 0.0
    %103 = vmatprep.subr.mxu0 0.0
    %104 = vmatpush1.msra.mxu0 0.0
    %105 = vmatprep.subr.mxu0 0.0
    %106 = vmatpush1.msra.mxu0 0.0
    %107 = vmatprep.subr.mxu0 0.0
    %108 = vmatpush1.msra.mxu0 0.0
    %109 = vmatprep.subr.mxu0 0.0
    %110 = vmatpush1.msra.mxu0 0.0
    %111 = vmatprep.mubr.f32.mxu0 0.0
    %112 = vmatmul.mubr.f32.gmra.mrb[0].mxu0 %v45
    %v113 = vpop.f32.mrb[0].mxu0
    %v114 = vadd.f32 0.0, %v113
    %v115 = vpop.f32.mrb[0].mxu0
    %116 = vdwg.mxu0
    %117 = vrot.lane.b32.xlu0 %v38, 96
    %v118 = vpop.permute.xlu0 %117
    %v120 = vmul.f32 %v114, %v118
    %v121 = vld [vmem:[#allocation5] sm:$0xff]
    %v122 = vld [vmem:[#allocation5 + $0x8] sm:$0xff]
    %v123 = vld [vmem:[#allocation5 + $0x10] sm:$0xff]
    %v124 = vld [vmem:[#allocation5 + $0x18] sm:$0xff]
    %v125 = vld [vmem:[#allocation5 + $0x20] sm:$0xff]
    %v126 = vld [vmem:[#allocation5 + $0x28] sm:$0xff]
    %v127 = vld [vmem:[#allocation5 + $0x30] sm:$0xff]
    %v128 = vld [vmem:[#allocation5 + $0x38] sm:$0xff]
    %137 = vrot.lane.b32.xlu0 %v121, 32
    %v138 = vpop.permute.xlu0 %137
    %139 = vrot.lane.b32.xlu0 %v122, 32
    %v140 = vpop.permute.xlu0 %139
    %141 = vrot.lane.b32.xlu0 %v123, 32
    %v142 = vpop.permute.xlu0 %141
    %143 = vrot.lane.b32.xlu0 %v124, 32
    %v144 = vpop.permute.xlu0 %143
    %145 = vrot.lane.b32.xlu0 %v125, 32
    %v146 = vpop.permute.xlu0 %145
    %147 = vrot.lane.b32.xlu0 %v126, 32
    %v148 = vpop.permute.xlu0 %147
    %149 = vrot.lane.b32.xlu0 %v127, 32
    %v150 = vpop.permute.xlu0 %149
    %151 = vrot.lane.b32.xlu0 %v128, 32
    %v152 = vpop.permute.xlu0 %151
    %v153 = vsel %vm43, %v138, %v140
    %v154 = vsel %vm43, %v142, %v144
    %v155 = vsel %vm43, %v146, %v148
    %v156 = vsel %vm43, %v150, %v152
    %v161 = vsel %vm43, %v118, 0
    %163 = vmatprep.subr.mxu0 0.0
    %164 = vmatpush1.msra.mxu0 %v153
    %165 = vmatprep.subr.mxu0 0.0
    %166 = vmatpush1.msra.mxu0 %v154
    %167 = vmatprep.subr.mxu0 0.0
    %168 = vmatpush1.msra.mxu0 %v155
    %169 = vmatprep.subr.mxu0 0.0
    %170 = vmatpush1.msra.mxu0 %v156
    %171 = vmatprep.subr.mxu0 0.0
    %172 = vmatpush1.msra.mxu0 0.0
    %173 = vmatprep.subr.mxu0 0.0
    %174 = vmatpush1.msra.mxu0 0.0
    %175 = vmatprep.subr.mxu0 0.0
    %176 = vmatpush1.msra.mxu0 0.0
    %177 = vmatprep.subr.mxu0 0.0
    %178 = vmatpush1.msra.mxu0 0.0
    %179 = vmatprep.subr.mxu0 0.0
    %180 = vmatpush1.msra.mxu0 0.0
    %181 = vmatprep.subr.mxu0 0.0
    %182 = vmatpush1.msra.mxu0 0.0
    %183 = vmatprep.subr.mxu0 0.0
    %184 = vmatpush1.msra.mxu0 0.0
    %185 = vmatprep.subr.mxu0 0.0
    %186 = vmatpush1.msra.mxu0 0.0
    %187 = vmatprep.subr.mxu0 0.0
    %188 = vmatpush1.msra.mxu0 0.0
    %189 = vmatprep.subr.mxu0 0.0
    %190 = vmatpush1.msra.mxu0 0.0
    %191 = vmatprep.subr.mxu0 0.0
    %192 = vmatpush1.msra.mxu0 0.0
    %193 = vmatprep.subr.mxu0 0.0
    %194 = vmatpush1.msra.mxu0 0.0
    %195 = vmatprep.subr.mxu0 0.0
    %196 = vmatpush1.msra.mxu0 0.0
    %197 = vmatprep.subr.mxu0 0.0
    %198 = vmatpush1.msra.mxu0 0.0
    %199 = vmatprep.subr.mxu0 0.0
    %200 = vmatpush1.msra.mxu0 0.0
    %201 = vmatprep.subr.mxu0 0.0
    %202 = vmatpush1.msra.mxu0 0.0
    %203 = vmatprep.subr.mxu0 0.0
    %204 = vmatpush1.msra.mxu0 0.0
    %205 = vmatprep.subr.mxu0 0.0
    %206 = vmatpush1.msra.mxu0 0.0
    %207 = vmatprep.subr.mxu0 0.0
    %208 = vmatpush1.msra.mxu0 0.0
    %209 = vmatprep.subr.mxu0 0.0
    %210 = vmatpush1.msra.mxu0 0.0
    %211 = vmatprep.subr.mxu0 0.0
    %212 = vmatpush1.msra.mxu0 0.0
    %213 = vmatprep.subr.mxu0 0.0
    %214 = vmatpush1.msra.mxu0 0.0
    %215 = vmatprep.subr.mxu0 0.0
    %216 = vmatpush1.msra.mxu0 0.0
    %217 = vmatprep.subr.mxu0 0.0
    %218 = vmatpush1.msra.mxu0 0.0
    %219 = vmatprep.subr.mxu0 0.0
    %220 = vmatpush1.msra.mxu0 0.0
    %221 = vmatprep.subr.mxu0 0.0
    %222 = vmatpush1.msra.mxu0 0.0
    %223 = vmatprep.subr.mxu0 0.0
    %224 = vmatpush1.msra.mxu0 0.0
    %225 = vmatprep.subr.mxu0 0.0
    %226 = vmatpush1.msra.mxu0 0.0
    %227 = vmatprep.mubr.f32.mxu0 0.0
    %228 = vmatmul.mubr.f32.gmra.mrb[0].mxu0 %v161
    %v229 = vpop.f32.mrb[0].mxu0
    %v230 = vadd.f32 0.0, %v229
    %v231 = vpop.f32.mrb[0].mxu0
    %232 = vdwg.mxu0
    %233 = vrot.lane.b32.xlu0 %v38, 64
    %v234 = vpop.permute.xlu0 %233
    %v236 = vmul.f32 %v230, %v234
    %237 = vrot.lane.b32.xlu0 %v122, 96
    %v238 = vpop.permute.xlu0 %237
    %239 = vrot.lane.b32.xlu0 %v124, 96
    %v240 = vpop.permute.xlu0 %239
    %241 = vrot.lane.b32.xlu0 %v126, 96
    %v242 = vpop.permute.xlu0 %241
    %243 = vrot.lane.b32.xlu0 %v128, 96
    %v244 = vpop.permute.xlu0 %243
    %v249 = vsel %vm43, %v234, 0
    %251 = vmatprep.subr.mxu0 0.0
    %252 = vmatpush1.msra.mxu0 %v238
    %253 = vmatprep.subr.mxu0 0.0
    %254 = vmatpush1.msra.mxu0 %v240
    %255 = vmatprep.subr.mxu0 0.0
    %256 = vmatpush1.msra.mxu0 %v242
    %257 = vmatprep.subr.mxu0 0.0
    %258 = vmatpush1.msra.mxu0 %v244
    %259 = vmatprep.subr.mxu0 0.0
    %260 = vmatpush1.msra.mxu0 0.0
    %261 = vmatprep.subr.mxu0 0.0
    %262 = vmatpush1.msra.mxu0 0.0
    %263 = vmatprep.subr.mxu0 0.0
    %264 = vmatpush1.msra.mxu0 0.0
    %265 = vmatprep.subr.mxu0 0.0
    %266 = vmatpush1.msra.mxu0 0.0
    %267 = vmatprep.subr.mxu0 0.0
    %268 = vmatpush1.msra.mxu0 0.0
    %269 = vmatprep.subr.mxu0 0.0
    %270 = vmatpush1.msra.mxu0 0.0
    %271 = vmatprep.subr.mxu0 0.0
    %272 = vmatpush1.msra.mxu0 0.0
    %273 = vmatprep.subr.mxu0 0.0
    %274 = vmatpush1.msra.mxu0 0.0
    %275 = vmatprep.subr.mxu0 0.0
    %276 = vmatpush1.msra.mxu0 0.0
    %277 = vmatprep.subr.mxu0 0.0
    %278 = vmatpush1.msra.mxu0 0.0
    %279 = vmatprep.subr.mxu0 0.0
    %280 = vmatpush1.msra.mxu0 0.0
    %281 = vmatprep.subr.mxu0 0.0
    %282 = vmatpush1.msra.mxu0 0.0
    %283 = vmatprep.subr.mxu0 0.0
    %284 = vmatpush1.msra.mxu0 0.0
    %285 = vmatprep.subr.mxu0 0.0
    %286 = vmatpush1.msra.mxu0 0.0
    %287 = vmatprep.subr.mxu0 0.0
    %288 = vmatpush1.msra.mxu0 0.0
    %289 = vmatprep.subr.mxu0 0.0
    %290 = vmatpush1.msra.mxu0 0.0
    %291 = vmatprep.subr.mxu0 0.0
    %292 = vmatpush1.msra.mxu0 0.0
    %293 = vmatprep.subr.mxu0 0.0
    %294 = vmatpush1.msra.mxu0 0.0
    %295 = vmatprep.subr.mxu0 0.0
    %296 = vmatpush1.msra.mxu0 0.0
    %297 = vmatprep.subr.mxu0 0.0
    %298 = vmatpush1.msra.mxu0 0.0
    %299 = vmatprep.subr.mxu0 0.0
    %300 = vmatpush1.msra.mxu0 0.0
    %301 = vmatprep.subr.mxu0 0.0
    %302 = vmatpush1.msra.mxu0 0.0
    %303 = vmatprep.subr.mxu0 0.0
    %304 = vmatpush1.msra.mxu0 0.0
    %305 = vmatprep.subr.mxu0 0.0
    %306 = vmatpush1.msra.mxu0 0.0
    %307 = vmatprep.subr.mxu0 0.0
    %308 = vmatpush1.msra.mxu0 0.0
    %309 = vmatprep.subr.mxu0 0.0
    %310 = vmatpush1.msra.mxu0 0.0
    %311 = vmatprep.subr.mxu0 0.0
    %312 = vmatpush1.msra.mxu0 0.0
    %313 = vmatprep.subr.mxu0 0.0
    %314 = vmatpush1.msra.mxu0 0.0
    %315 = vmatprep.mubr.f32.mxu0 0.0
    %316 = vmatmul.mubr.f32.gmra.mrb[0].mxu0 %v249
    %v317 = vpop.f32.mrb[0].mxu0
    %v318 = vadd.f32 0.0, %v317
    %v319 = vpop.f32.mrb[0].mxu0
    %320 = vdwg.mxu0
    %321 = vrot.lane.b32.xlu0 %v38, 32
    %v322 = vpop.permute.xlu0 %321
    %v324 = vmul.f32 %v318, %v322
    %326 = vrot.lane.b32.xlu0 %v236, 96
    %v327 = vpop.permute.xlu0 %326
    %330 = vrot.lane.b32.xlu0 %v324, 32
    %v331 = vpop.permute.xlu0 %330
    %vm333 = vcmask 785408
    %v334 = vsel %vm333, %v120, %v327
    %v335 = vsel %vm43, %v327, %v331
    %336 = vst [vmem:[#allocation7] sm:$0xff] %v334
    %vm337 = vcmask 523264
    %338 = vst.msk [vmem:[#allocation7 + $0x8] sm:$0xff] %vm337, %v335
    // Predicated region
    $region18: #{tpu_custom_call.1} parent=1 // pred_check
      _
    $region19: #{tpu_custom_call.1} parent=1 // pred_check_branch
      %340 = sbr.rel (0) target = $region21
    $region20: #{tpu_custom_call.1} parent=1 // pred_region
      %s342 = ssub.s32 256, 256
      %343 = vsyncadd [#allocation4], %s342
      %s345 = sshll.u32 [#allocation7], 4
      %s346 = int_to_ptr.vmem [resolvable:$true] %s345
      %348 = dma.vmem_to_hbm [thread:$0]  %s346, 256, %s2, [#allocation4]
    $region21: #{tpu_custom_call.1} parent=1 // pred_fallthru
      _
    // Predicated region
    $region22: #{tpu_custom_call.1} parent=1 // pred_check
      _
    $region23: #{tpu_custom_call.1} parent=1 // pred_check_branch
      %350 = sbr.rel (0) target = $region25
    $region24: #{tpu_custom_call.1} parent=1 // pred_region
      %351 = dma.done [#allocation4], 256
    $region25: #{tpu_custom_call.1} parent=1 // pred_fallthru
      _
    %352 = vsyncpa [#allocation3], 1
    %353 = vsyncpa [#allocation6], 1
    %354 = vsyncpa [#allocation4], 1

// kernel: tpu_custom_call.1
$region0: #{tpu_custom_call.1}
  #allocation0 [shape = 'u32[]', space=smem, size = 0x4, offset = 0x4, fixed_abs, tag = 'smem constant byte address 0x4 - core index']
  #allocation1 [shape = 'u32[144,128]{1,0:T(1,128)}', space=vmem, size = 0x12000, scoped, tag = 'internal scratch']
  %s0 = inlined_call_operand.hbm [shape: f32[8,128], index: 0, kind: input, shape index: {}]
  %s1 = inlined_call_operand.hbm [shape: f32[32,192], index: 1, kind: input, shape index: {}]
  %s2 = inlined_call_operand.hbm [shape: f32[8,192], index: 2, kind: output, shape index: {}]
  %s3 = sld [smem:[#allocation0]]
  $region26: #{tpu_custom_call.1} parent=0
    _
  %s5 = ssub.s32 1, %s3
  %s6 = scalar_select 0, %s5, %s3
  $region1: #{tpu_custom_call.1} parent=0
    #allocation2 [shape = 'u8[4096]{0}', space=vmem, size = 0x1000, scoped, tag = 'input window, operand 0, single buffered']
    #allocation3 [shape = 's32[1]{0}', space=sflag, size = 0x4, scoped, tag = 'scoped memory for tpu_custom_call.1']
    #allocation4 [shape = 's32[1]{0}', space=sflag, size = 0x4, scoped, tag = 'scoped memory for tpu_custom_call.1']
    #allocation5 [shape = 'u8[32768]{0}', space=vmem, size = 0x8000, scoped, tag = 'input window, operand 1, single buffered']
    #allocation6 [shape = 's32[1]{0}', space=sflag, size = 0x4, scoped, tag = 'scoped memory for tpu_custom_call.1']
    #allocation7 [shape = 'u8[8192]{0}', space=vmem, size = 0x2000, scoped, tag = 'output window, operand 0, single buffered']
    %7 = vsyncpa [#allocation3], 0
    %8 = vsyncpa [#allocation6], 0
    %9 = vsyncpa [#allocation4], 0
    // Predicated region
    $region2: #{tpu_custom_call.1} parent=1 // pred_check
      _
    $region3: #{tpu_custom_call.1} parent=1 // pred_check_branch
      %11 = sbr.rel (0) target = $region5
    $region4: #{tpu_custom_call.1} parent=1 // pred_region
      %s13 = ssub.s32 128, 128
      %14 = vsyncadd [#allocation3], %s13
      %s16 = sshll.u32 [#allocation2], 4
      %s17 = int_to_ptr.vmem [resolvable:$true] %s16
      %19 = dma.hbm_to_vmem [thread:$0]  %s0, 128, %s17, [#allocation3]
    $region5: #{tpu_custom_call.1} parent=1 // pred_fallthru
      _
    // Predicated region
    $region6: #{tpu_custom_call.1} parent=1 // pred_check
      _
    $region7: #{tpu_custom_call.1} parent=1 // pred_check_branch
      %21 = sbr.rel (0) target = $region9
    $region8: #{tpu_custom_call.1} parent=1 // pred_region
      %s23 = ssub.s32 1024, 1024
      %24 = vsyncadd [#allocation6], %s23
      %s25 = sshll.u32 [#allocation5], 4
      %s26 = int_to_ptr.vmem [resolvable:$true] %s25
      %31 = dma.hbm_to_vmem [thread:$0]  %s1, 1024, %s26, [#allocation6], 256, 256, 16
    $region9: #{tpu_custom_call.1} parent=1 // pred_fallthru
      _
    // Predicated region
    $region10: #{tpu_custom_call.1} parent=1 // pred_check
      _
    $region11: #{tpu_custom_call.1} parent=1 // pred_check_branch
      %33 = sbr.rel (0) target = $region13
    $region12: #{tpu_custom_call.1} parent=1 // pred_region
      %34 = dma.done [#allocation3], 128
    $region13: #{tpu_custom_call.1} parent=1 // pred_fallthru
      _
    // Predicated region
    $region14: #{tpu_custom_call.1} parent=1 // pred_check
      _
    $region15: #{tpu_custom_call.1} parent=1 // pred_check_branch
      %36 = sbr.rel (0) target = $region17
    $region16: #{tpu_custom_call.1} parent=1 // pred_region
      %37 = dma.done [#allocation6], 1024
    $region17: #{tpu_custom_call.1} parent=1 // pred_fallthru
      _
    %v38 = vld [vmem:[#allocation2] sm:$0xff]
    %v39 = vld [vmem:[#allocation5] sm:$0xff]
    %v40 = vld [vmem:[#allocation5 + $0x10] sm:$0xff]
    %v41 = vld [vmem:[#allocation5 + $0x20] sm:$0xff]
    %v42 = vld [vmem:[#allocation5 + $0x30] sm:$0xff]
    %vm43 = vcmask 261120
    %v45 = vsel %vm43, %v38, 0
    %47 = vmatprep.subr.mxu0 0.0
    %48 = vmatpush1.msra.mxu0 %v39
    %49 = vmatprep.subr.mxu0 0.0
    %50 = vmatpush1.msra.mxu0 %v40
    %51 = vmatprep.subr.mxu0 0.0
    %52 = vmatpush1.msra.mxu0 %v41
    %53 = vmatprep.subr.mxu0 0.0
    %54 = vmatpush1.msra.mxu0 %v42
    %55 = vmatprep.subr.mxu0 0.0
    %56 = vmatpush1.msra.mxu0 0.0
    %57 = vmatprep.subr.mxu0 0.0
    %58 = vmatpush1.msra.mxu0 0.0
    %59 = vmatprep.subr.mxu0 0.0
    %60 = vmatpush1.msra.mxu0 0.0
    %61 = vmatprep.subr.mxu0 0.0
    %62 = vmatpush1.msra.mxu0 0.0
    %63 = vmatprep.subr.mxu0 0.0
    %64 = vmatpush1.msra.mxu0 0.0
    %65 = vmatprep.subr.mxu0 0.0
    %66 = vmatpush1.msra.mxu0 0.0
    %67 = vmatprep.subr.mxu0 0.0
    %68 = vmatpush1.msra.mxu0 0.0
    %69 = vmatprep.subr.mxu0 0.0
    %70 = vmatpush1.msra.mxu0 0.0
    %71 = vmatprep.subr.mxu0 0.0
    %72 = vmatpush1.msra.mxu0 0.0
    %73 = vmatprep.subr.mxu0 0.0
    %74 = vmatpush1.msra.mxu0 0.0
    %75 = vmatprep.subr.mxu0 0.0
    %76 = vmatpush1.msra.mxu0 0.0
    %77 = vmatprep.subr.mxu0 0.0
    %78 = vmatpush1.msra.mxu0 0.0
    %79 = vmatprep.subr.mxu0 0.0
    %80 = vmatpush1.msra.mxu0 0.0
    %81 = vmatprep.subr.mxu0 0.0
    %82 = vmatpush1.msra.mxu0 0.0
    %83 = vmatprep.subr.mxu0 0.0
    %84 = vmatpush1.msra.mxu0 0.0
    %85 = vmatprep.subr.mxu0 0.0
    %86 = vmatpush1.msra.mxu0 0.0
    %87 = vmatprep.subr.mxu0 0.0
    %88 = vmatpush1.msra.mxu0 0.0
    %89 = vmatprep.subr.mxu0 0.0
    %90 = vmatpush1.msra.mxu0 0.0
    %91 = vmatprep.subr.mxu0 0.0
    %92 = vmatpush1.msra.mxu0 0.0
    %93 = vmatprep.subr.mxu0 0.0
    %94 = vmatpush1.msra.mxu0 0.0
    %95 = vmatprep.subr.mxu0 0.0
    %96 = vmatpush1.msra.mxu0 0.0
    %97 = vmatprep.subr.mxu0 0.0
    %98 = vmatpush1.msra.mxu0 0.0
    %99 = vmatprep.subr.mxu0 0.0
    %100 = vmatpush1.msra.mxu0 0.0
    %101 = vmatprep.subr.mxu0 0.0
    %102 = vmatpush1.msra.mxu0 0.0
    %103 = vmatprep.subr.mxu0 0.0
    %104 = vmatpush1.msra.mxu0 0.0
    %105 = vmatprep.subr.mxu0 0.0
    %106 = vmatpush1.msra.mxu0 0.0
    %107 = vmatprep.subr.mxu0 0.0
    %108 = vmatpush1.msra.mxu0 0.0
    %109 = vmatprep.subr.mxu0 0.0
    %110 = vmatpush1.msra.mxu0 0.0
    %111 = vmatprep.mubr.f32.mxu0 0.0
    %112 = vmatmul.mubr.f32.gmra.mrb[0].mxu0 %v45
    %v113 = vpop.f32.mrb[0].mxu0
    %v114 = vadd.f32 0.0, %v113
    %v115 = vpop.f32.mrb[0].mxu0
    %116 = vdwg.mxu0
    %117 = vrot.lane.b32.xlu0 %v38, 96
    %v118 = vpop.permute.xlu0 %117
    %v120 = vmul.f32 %v114, %v118
    %v121 = vld [vmem:[#allocation5] sm:$0xff]
    %v122 = vld [vmem:[#allocation5 + $0x8] sm:$0xff]
    %v123 = vld [vmem:[#allocation5 + $0x10] sm:$0xff]
    %v124 = vld [vmem:[#allocation5 + $0x18] sm:$0xff]
    %v125 = vld [vmem:[#allocation5 + $0x20] sm:$0xff]
    %v126 = vld [vmem:[#allocation5 + $0x28] sm:$0xff]
    %v127 = vld [vmem:[#allocation5 + $0x30] sm:$0xff]
    %v128 = vld [vmem:[#allocation5 + $0x38] sm:$0xff]
    %137 = vrot.lane.b32.xlu0 %v121, 32
    %v138 = vpop.permute.xlu0 %137
    %139 = vrot.lane.b32.xlu0 %v122, 32
    %v140 = vpop.permute.xlu0 %139
    %141 = vrot.lane.b32.xlu0 %v123, 32
    %v142 = vpop.permute.xlu0 %141
    %143 = vrot.lane.b32.xlu0 %v124, 32
    %v144 = vpop.permute.xlu0 %143
    %145 = vrot.lane.b32.xlu0 %v125, 32
    %v146 = vpop.permute.xlu0 %145
    %147 = vrot.lane.b32.xlu0 %v126, 32
    %v148 = vpop.permute.xlu0 %147
    %149 = vrot.lane.b32.xlu0 %v127, 32
    %v150 = vpop.permute.xlu0 %149
    %151 = vrot.lane.b32.xlu0 %v128, 32
    %v152 = vpop.permute.xlu0 %151
    %v153 = vsel %vm43, %v138, %v140
    %v154 = vsel %vm43, %v142, %v144
    %v155 = vsel %vm43, %v146, %v148
    %v156 = vsel %vm43, %v150, %v152
    %v161 = vsel %vm43, %v118, 0
    %163 = vmatprep.subr.mxu0 0.0
    %164 = vmatpush1.msra.mxu0 %v153
    %165 = vmatprep.subr.mxu0 0.0
    %166 = vmatpush1.msra.mxu0 %v154
    %167 = vmatprep.subr.mxu0 0.0
    %168 = vmatpush1.msra.mxu0 %v155
    %169 = vmatprep.subr.mxu0 0.0
    %170 = vmatpush1.msra.mxu0 %v156
    %171 = vmatprep.subr.mxu0 0.0
    %172 = vmatpush1.msra.mxu0 0.0
    %173 = vmatprep.subr.mxu0 0.0
    %174 = vmatpush1.msra.mxu0 0.0
    %175 = vmatprep.subr.mxu0 0.0
    %176 = vmatpush1.msra.mxu0 0.0
    %177 = vmatprep.subr.mxu0 0.0
    %178 = vmatpush1.msra.mxu0 0.0
    %179 = vmatprep.subr.mxu0 0.0
    %180 = vmatpush1.msra.mxu0 0.0
    %181 = vmatprep.subr.mxu0 0.0
    %182 = vmatpush1.msra.mxu0 0.0
    %183 = vmatprep.subr.mxu0 0.0
    %184 = vmatpush1.msra.mxu0 0.0
    %185 = vmatprep.subr.mxu0 0.0
    %186 = vmatpush1.msra.mxu0 0.0
    %187 = vmatprep.subr.mxu0 0.0
    %188 = vmatpush1.msra.mxu0 0.0
    %189 = vmatprep.subr.mxu0 0.0
    %190 = vmatpush1.msra.mxu0 0.0
    %191 = vmatprep.subr.mxu0 0.0
    %192 = vmatpush1.msra.mxu0 0.0
    %193 = vmatprep.subr.mxu0 0.0
    %194 = vmatpush1.msra.mxu0 0.0
    %195 = vmatprep.subr.mxu0 0.0
    %196 = vmatpush1.msra.mxu0 0.0
    %197 = vmatprep.subr.mxu0 0.0
    %198 = vmatpush1.msra.mxu0 0.0
    %199 = vmatprep.subr.mxu0 0.0
    %200 = vmatpush1.msra.mxu0 0.0
    %201 = vmatprep.subr.mxu0 0.0
    %202 = vmatpush1.msra.mxu0 0.0
    %203 = vmatprep.subr.mxu0 0.0
    %204 = vmatpush1.msra.mxu0 0.0
    %205 = vmatprep.subr.mxu0 0.0
    %206 = vmatpush1.msra.mxu0 0.0
    %207 = vmatprep.subr.mxu0 0.0
    %208 = vmatpush1.msra.mxu0 0.0
    %209 = vmatprep.subr.mxu0 0.0
    %210 = vmatpush1.msra.mxu0 0.0
    %211 = vmatprep.subr.mxu0 0.0
    %212 = vmatpush1.msra.mxu0 0.0
    %213 = vmatprep.subr.mxu0 0.0
    %214 = vmatpush1.msra.mxu0 0.0
    %215 = vmatprep.subr.mxu0 0.0
    %216 = vmatpush1.msra.mxu0 0.0
    %217 = vmatprep.subr.mxu0 0.0
    %218 = vmatpush1.msra.mxu0 0.0
    %219 = vmatprep.subr.mxu0 0.0
    %220 = vmatpush1.msra.mxu0 0.0
    %221 = vmatprep.subr.mxu0 0.0
    %222 = vmatpush1.msra.mxu0 0.0
    %223 = vmatprep.subr.mxu0 0.0
    %224 = vmatpush1.msra.mxu0 0.0
    %225 = vmatprep.subr.mxu0 0.0
    %226 = vmatpush1.msra.mxu0 0.0
    %227 = vmatprep.mubr.f32.mxu0 0.0
    %228 = vmatmul.mubr.f32.gmra.mrb[0].mxu0 %v161
    %v229 = vpop.f32.mrb[0].mxu0
    %v230 = vadd.f32 0.0, %v229
    %v231 = vpop.f32.mrb[0].mxu0
    %232 = vdwg.mxu0
    %233 = vrot.lane.b32.xlu0 %v38, 64
    %v234 = vpop.permute.xlu0 %233
    %v236 = vmul.f32 %v230, %v234
    %237 = vrot.lane.b32.xlu0 %v122, 96
    %v238 = vpop.permute.xlu0 %237
    %239 = vrot.lane.b32.xlu0 %v124, 96
    %v240 = vpop.permute.xlu0 %239
    %241 = vrot.lane.b32.xlu0 %v126, 96
    %v242 = vpop.permute.xlu0 %241
    %243 = vrot.lane.b32.xlu0 %v128, 96
    %v244 = vpop.permute.xlu0 %243
    %v249 = vsel %vm43, %v234, 0
    %251 = vmatprep.subr.mxu0 0.0
    %252 = vmatpush1.msra.mxu0 %v238
    %253 = vmatprep.subr.mxu0 0.0
    %254 = vmatpush1.msra.mxu0 %v240
    %255 = vmatprep.subr.mxu0 0.0
    %256 = vmatpush1.msra.mxu0 %v242
    %257 = vmatprep.subr.mxu0 0.0
    %258 = vmatpush1.msra.mxu0 %v244
    %259 = vmatprep.subr.mxu0 0.0
    %260 = vmatpush1.msra.mxu0 0.0
    %261 = vmatprep.subr.mxu0 0.0
    %262 = vmatpush1.msra.mxu0 0.0
    %263 = vmatprep.subr.mxu0 0.0
    %264 = vmatpush1.msra.mxu0 0.0
    %265 = vmatprep.subr.mxu0 0.0
    %266 = vmatpush1.msra.mxu0 0.0
    %267 = vmatprep.subr.mxu0 0.0
    %268 = vmatpush1.msra.mxu0 0.0
    %269 = vmatprep.subr.mxu0 0.0
    %270 = vmatpush1.msra.mxu0 0.0
    %271 = vmatprep.subr.mxu0 0.0
    %272 = vmatpush1.msra.mxu0 0.0
    %273 = vmatprep.subr.mxu0 0.0
    %274 = vmatpush1.msra.mxu0 0.0
    %275 = vmatprep.subr.mxu0 0.0
    %276 = vmatpush1.msra.mxu0 0.0
    %277 = vmatprep.subr.mxu0 0.0
    %278 = vmatpush1.msra.mxu0 0.0
    %279 = vmatprep.subr.mxu0 0.0
    %280 = vmatpush1.msra.mxu0 0.0
    %281 = vmatprep.subr.mxu0 0.0
    %282 = vmatpush1.msra.mxu0 0.0
    %283 = vmatprep.subr.mxu0 0.0
    %284 = vmatpush1.msra.mxu0 0.0
    %285 = vmatprep.subr.mxu0 0.0
    %286 = vmatpush1.msra.mxu0 0.0
    %287 = vmatprep.subr.mxu0 0.0
    %288 = vmatpush1.msra.mxu0 0.0
    %289 = vmatprep.subr.mxu0 0.0
    %290 = vmatpush1.msra.mxu0 0.0
    %291 = vmatprep.subr.mxu0 0.0
    %292 = vmatpush1.msra.mxu0 0.0
    %293 = vmatprep.subr.mxu0 0.0
    %294 = vmatpush1.msra.mxu0 0.0
    %295 = vmatprep.subr.mxu0 0.0
    %296 = vmatpush1.msra.mxu0 0.0
    %297 = vmatprep.subr.mxu0 0.0
    %298 = vmatpush1.msra.mxu0 0.0
    %299 = vmatprep.subr.mxu0 0.0
    %300 = vmatpush1.msra.mxu0 0.0
    %301 = vmatprep.subr.mxu0 0.0
    %302 = vmatpush1.msra.mxu0 0.0
    %303 = vmatprep.subr.mxu0 0.0
    %304 = vmatpush1.msra.mxu0 0.0
    %305 = vmatprep.subr.mxu0 0.0
    %306 = vmatpush1.msra.mxu0 0.0
    %307 = vmatprep.subr.mxu0 0.0
    %308 = vmatpush1.msra.mxu0 0.0
    %309 = vmatprep.subr.mxu0 0.0
    %310 = vmatpush1.msra.mxu0 0.0
    %311 = vmatprep.subr.mxu0 0.0
    %312 = vmatpush1.msra.mxu0 0.0
    %313 = vmatprep.subr.mxu0 0.0
    %314 = vmatpush1.msra.mxu0 0.0
    %315 = vmatprep.mubr.f32.mxu0 0.0
    %316 = vmatmul.mubr.f32.gmra.mrb[0].mxu0 %v249
    %v317 = vpop.f32.mrb[0].mxu0
    %v318 = vadd.f32 0.0, %v317
    %v319 = vpop.f32.mrb[0].mxu0
    %320 = vdwg.mxu0
    %321 = vrot.lane.b32.xlu0 %v38, 32
    %v322 = vpop.permute.xlu0 %321
    %v324 = vmul.f32 %v318, %v322
    %326 = vrot.lane.b32.xlu0 %v236, 96
    %v327 = vpop.permute.xlu0 %326
    %330 = vrot.lane.b32.xlu0 %v324, 32
    %v331 = vpop.permute.xlu0 %330
    %vm333 = vcmask 785408
    %v334 = vsel %vm333, %v120, %v327
    %v335 = vsel %vm43, %v327, %v331
    %336 = vst [vmem:[#allocation7] sm:$0xff] %v334
    %vm337 = vcmask 523264
    %338 = vst.msk [vmem:[#allocation7 + $0x8] sm:$0xff] %vm337, %v335
    // Predicated region
    $region18: #{tpu_custom_call.1} parent=1 // pred_check
      _
    $region19: #{tpu_custom_call.1} parent=1 // pred_check_branch
      %340 = sbr.rel (0) target = $region21
    $region20: #{tpu_custom_call.1} parent=1 // pred_region
      %s342 = ssub.s32 256, 256
      %343 = vsyncadd [#allocation4], %s342
      %s345 = sshll.u32 [#allocation7], 4
      %s346 = int_to_ptr.vmem [resolvable:$true] %s345
      %348 = dma.vmem_to_hbm [thread:$0]  %s346, 256, %s2, [#allocation4]
    $region21: #{tpu_custom_call.1} parent=1 // pred_fallthru
      _
    // Predicated region
    $region22: #{tpu_custom_call.1} parent=1 // pred_check
      _
    $region23: #{tpu_custom_call.1} parent=1 // pred_check_branch
      %350 = sbr.rel (0) target = $region25
    $region24: #{tpu_custom_call.1} parent=1 // pred_region
      %351 = dma.done [#allocation4], 256
    $region25: #{tpu_custom_call.1} parent=1 // pred_fallthru
      _
    %352 = vsyncpa [#allocation3], 1
    %353 = vsyncpa [#allocation6], 1
    %354 = vsyncpa [#allocation4], 1

// kernel: tpu_custom_call.1
$region0: #{tpu_custom_call.1}
  #allocation0 [shape = 'u32[]', space=smem, size = 0x4, offset = 0x4, fixed_abs, tag = 'smem constant byte address 0x4 - core index']
  #allocation1 [shape = 'u32[144,128]{1,0:T(1,128)}', space=vmem, size = 0x12000, scoped, tag = 'internal scratch']
  %s0 = inlined_call_operand.hbm [shape: f32[8,128], index: 0, kind: input, shape index: {}]
  %s1 = inlined_call_operand.hbm [shape: f32[32,192], index: 1, kind: input, shape index: {}]
  %s2 = inlined_call_operand.hbm [shape: f32[8,192], index: 2, kind: output, shape index: {}]
  %s3 = sld [smem:[#allocation0]]
  $region26: #{tpu_custom_call.1} parent=0
    _
  %s5 = ssub.s32 1, %s3
  %s6 = scalar_select 0, %s5, %s3
  $region1: #{tpu_custom_call.1} parent=0
    #allocation2 [shape = 'u8[4096]{0}', space=vmem, size = 0x1000, scoped, tag = 'input window, operand 0, single buffered']
    #allocation3 [shape = 's32[1]{0}', space=sflag, size = 0x4, scoped, tag = 'scoped memory for tpu_custom_call.1']
    #allocation4 [shape = 's32[1]{0}', space=sflag, size = 0x4, scoped, tag = 'scoped memory for tpu_custom_call.1']
    #allocation5 [shape = 'u8[32768]{0}', space=vmem, size = 0x8000, scoped, tag = 'input window, operand 1, single buffered']
    #allocation6 [shape = 's32[1]{0}', space=sflag, size = 0x4, scoped, tag = 'scoped memory for tpu_custom_call.1']
    #allocation7 [shape = 'u8[8192]{0}', space=vmem, size = 0x2000, scoped, tag = 'output window, operand 0, single buffered']
    %7 = vsyncpa [#allocation3], 0
    %8 = vsyncpa [#allocation6], 0
    %9 = vsyncpa [#allocation4], 0
    // Predicated region
    $region2: #{tpu_custom_call.1} parent=1 // pred_check
      _
    $region3: #{tpu_custom_call.1} parent=1 // pred_check_branch
      %11 = sbr.rel (0) target = $region5
    $region4: #{tpu_custom_call.1} parent=1 // pred_region
      %s13 = ssub.s32 128, 128
      %14 = vsyncadd [#allocation3], %s13
      %s16 = sshll.u32 [#allocation2], 4
      %s17 = int_to_ptr.vmem [resolvable:$true] %s16
      %19 = dma.hbm_to_vmem [thread:$0]  %s0, 128, %s17, [#allocation3]
    $region5: #{tpu_custom_call.1} parent=1 // pred_fallthru
      _
    // Predicated region
    $region6: #{tpu_custom_call.1} parent=1 // pred_check
      _
    $region7: #{tpu_custom_call.1} parent=1 // pred_check_branch
      %21 = sbr.rel (0) target = $region9
    $region8: #{tpu_custom_call.1} parent=1 // pred_region
      %s23 = ssub.s32 1024, 1024
      %24 = vsyncadd [#allocation6], %s23
      %s25 = sshll.u32 [#allocation5], 4
      %s26 = int_to_ptr.vmem [resolvable:$true] %s25
      %31 = dma.hbm_to_vmem [thread:$0]  %s1, 1024, %s26, [#allocation6], 256, 256, 16
    $region9: #{tpu_custom_call.1} parent=1 // pred_fallthru
      _
    // Predicated region
    $region10: #{tpu_custom_call.1} parent=1 // pred_check
      _
    $region11: #{tpu_custom_call.1} parent=1 // pred_check_branch
      %33 = sbr.rel (0) target = $region13
    $region12: #{tpu_custom_call.1} parent=1 // pred_region
      %34 = dma.done [#allocation3], 128
    $region13: #{tpu_custom_call.1} parent=1 // pred_fallthru
      _
    // Predicated region
    $region14: #{tpu_custom_call.1} parent=1 // pred_check
      _
    $region15: #{tpu_custom_call.1} parent=1 // pred_check_branch
      %36 = sbr.rel (0) target = $region17
    $region16: #{tpu_custom_call.1} parent=1 // pred_region
      %37 = dma.done [#allocation6], 1024
    $region17: #{tpu_custom_call.1} parent=1 // pred_fallthru
      _
    %v38 = vld [vmem:[#allocation2] sm:$0xff]
    %v39 = vld [vmem:[#allocation5] sm:$0xff]
    %v40 = vld [vmem:[#allocation5 + $0x10] sm:$0xff]
    %v41 = vld [vmem:[#allocation5 + $0x20] sm:$0xff]
    %v42 = vld [vmem:[#allocation5 + $0x30] sm:$0xff]
    %vm43 = vcmask 261120
    %v45 = vsel %vm43, %v38, 0
    %47 = vmatprep.subr.mxu0 0.0
    %48 = vmatpush1.msra.mxu0 %v39
    %49 = vmatprep.subr.mxu0 0.0
    %50 = vmatpush1.msra.mxu0 %v40
    %51 = vmatprep.subr.mxu0 0.0
    %52 = vmatpush1.msra.mxu0 %v41
    %53 = vmatprep.subr.mxu0 0.0
    %54 = vmatpush1.msra.mxu0 %v42
    %55 = vmatprep.subr.mxu0 0.0
    %56 = vmatpush1.msra.mxu0 0.0
    %57 = vmatprep.subr.mxu0 0.0
    %58 = vmatpush1.msra.mxu0 0.0
    %59 = vmatprep.subr.mxu0 0.0
    %60 = vmatpush1.msra.mxu0 0.0
    %61 = vmatprep.subr.mxu0 0.0
    %62 = vmatpush1.msra.mxu0 0.0
    %63 = vmatprep.subr.mxu0 0.0
    %64 = vmatpush1.msra.mxu0 0.0
    %65 = vmatprep.subr.mxu0 0.0
    %66 = vmatpush1.msra.mxu0 0.0
    %67 = vmatprep.subr.mxu0 0.0
    %68 = vmatpush1.msra.mxu0 0.0
    %69 = vmatprep.subr.mxu0 0.0
    %70 = vmatpush1.msra.mxu0 0.0
    %71 = vmatprep.subr.mxu0 0.0
    %72 = vmatpush1.msra.mxu0 0.0
    %73 = vmatprep.subr.mxu0 0.0
    %74 = vmatpush1.msra.mxu0 0.0
    %75 = vmatprep.subr.mxu0 0.0
    %76 = vmatpush1.msra.mxu0 0.0
    %77 = vmatprep.subr.mxu0 0.0
    %78 = vmatpush1.msra.mxu0 0.0
    %79 = vmatprep.subr.mxu0 0.0
    %80 = vmatpush1.msra.mxu0 0.0
    %81 = vmatprep.subr.mxu0 0.0
    %82 = vmatpush1.msra.mxu0 0.0
    %83 = vmatprep.subr.mxu0 0.0
    %84 = vmatpush1.msra.mxu0 0.0
    %85 = vmatprep.subr.mxu0 0.0
    %86 = vmatpush1.msra.mxu0 0.0
    %87 = vmatprep.subr.mxu0 0.0
    %88 = vmatpush1.msra.mxu0 0.0
    %89 = vmatprep.subr.mxu0 0.0
    %90 = vmatpush1.msra.mxu0 0.0
    %91 = vmatprep.subr.mxu0 0.0
    %92 = vmatpush1.msra.mxu0 0.0
    %93 = vmatprep.subr.mxu0 0.0
    %94 = vmatpush1.msra.mxu0 0.0
    %95 = vmatprep.subr.mxu0 0.0
    %96 = vmatpush1.msra.mxu0 0.0
    %97 = vmatprep.subr.mxu0 0.0
    %98 = vmatpush1.msra.mxu0 0.0
    %99 = vmatprep.subr.mxu0 0.0
    %100 = vmatpush1.msra.mxu0 0.0
    %101 = vmatprep.subr.mxu0 0.0
    %102 = vmatpush1.msra.mxu0 0.0
    %103 = vmatprep.subr.mxu0 0.0
    %104 = vmatpush1.msra.mxu0 0.0
    %105 = vmatprep.subr.mxu0 0.0
    %106 = vmatpush1.msra.mxu0 0.0
    %107 = vmatprep.subr.mxu0 0.0
    %108 = vmatpush1.msra.mxu0 0.0
    %109 = vmatprep.subr.mxu0 0.0
    %110 = vmatpush1.msra.mxu0 0.0
    %111 = vmatprep.mubr.f32.mxu0 0.0
    %112 = vmatmul.mubr.f32.gmra.mrb[0].mxu0 %v45
    %v113 = vpop.f32.mrb[0].mxu0
    %v114 = vadd.f32 0.0, %v113
    %v115 = vpop.f32.mrb[0].mxu0
    %116 = vdwg.mxu0
    %117 = vrot.lane.b32.xlu0 %v38, 96
    %v118 = vpop.permute.xlu0 %117
    %v120 = vmul.f32 %v114, %v118
    %vm121 = vcmask 785408
    %122 = vst.msk [vmem:[#allocation7] sm:$0xff] %vm121, %v120
    %v123 = vld [vmem:[#allocation5] sm:$0xff]
    %v124 = vld [vmem:[#allocation5 + $0x8] sm:$0xff]
    %v125 = vld [vmem:[#allocation5 + $0x10] sm:$0xff]
    %v126 = vld [vmem:[#allocation5 + $0x18] sm:$0xff]
    %v127 = vld [vmem:[#allocation5 + $0x20] sm:$0xff]
    %v128 = vld [vmem:[#allocation5 + $0x28] sm:$0xff]
    %v129 = vld [vmem:[#allocation5 + $0x30] sm:$0xff]
    %v130 = vld [vmem:[#allocation5 + $0x38] sm:$0xff]
    %139 = vrot.lane.b32.xlu0 %v123, 32
    %v140 = vpop.permute.xlu0 %139
    %141 = vrot.lane.b32.xlu0 %v124, 32
    %v142 = vpop.permute.xlu0 %141
    %143 = vrot.lane.b32.xlu0 %v125, 32
    %v144 = vpop.permute.xlu0 %143
    %145 = vrot.lane.b32.xlu0 %v126, 32
    %v146 = vpop.permute.xlu0 %145
    %147 = vrot.lane.b32.xlu0 %v127, 32
    %v148 = vpop.permute.xlu0 %147
    %149 = vrot.lane.b32.xlu0 %v128, 32
    %v150 = vpop.permute.xlu0 %149
    %151 = vrot.lane.b32.xlu0 %v129, 32
    %v152 = vpop.permute.xlu0 %151
    %153 = vrot.lane.b32.xlu0 %v130, 32
    %v154 = vpop.permute.xlu0 %153
    %v155 = vsel %vm43, %v140, %v142
    %v156 = vsel %vm43, %v144, %v146
    %v157 = vsel %vm43, %v148, %v150
    %v158 = vsel %vm43, %v152, %v154
    %v163 = vsel %vm43, %v118, 0
    %165 = vmatprep.subr.mxu0 0.0
    %166 = vmatpush1.msra.mxu0 %v155
    %167 = vmatprep.subr.mxu0 0.0
    %168 = vmatpush1.msra.mxu0 %v156
    %169 = vmatprep.subr.mxu0 0.0
    %170 = vmatpush1.msra.mxu0 %v157
    %171 = vmatprep.subr.mxu0 0.0
    %172 = vmatpush1.msra.mxu0 %v158
    %173 = vmatprep.subr.mxu0 0.0
    %174 = vmatpush1.msra.mxu0 0.0
    %175 = vmatprep.subr.mxu0 0.0
    %176 = vmatpush1.msra.mxu0 0.0
    %177 = vmatprep.subr.mxu0 0.0
    %178 = vmatpush1.msra.mxu0 0.0
    %179 = vmatprep.subr.mxu0 0.0
    %180 = vmatpush1.msra.mxu0 0.0
    %181 = vmatprep.subr.mxu0 0.0
    %182 = vmatpush1.msra.mxu0 0.0
    %183 = vmatprep.subr.mxu0 0.0
    %184 = vmatpush1.msra.mxu0 0.0
    %185 = vmatprep.subr.mxu0 0.0
    %186 = vmatpush1.msra.mxu0 0.0
    %187 = vmatprep.subr.mxu0 0.0
    %188 = vmatpush1.msra.mxu0 0.0
    %189 = vmatprep.subr.mxu0 0.0
    %190 = vmatpush1.msra.mxu0 0.0
    %191 = vmatprep.subr.mxu0 0.0
    %192 = vmatpush1.msra.mxu0 0.0
    %193 = vmatprep.subr.mxu0 0.0
    %194 = vmatpush1.msra.mxu0 0.0
    %195 = vmatprep.subr.mxu0 0.0
    %196 = vmatpush1.msra.mxu0 0.0
    %197 = vmatprep.subr.mxu0 0.0
    %198 = vmatpush1.msra.mxu0 0.0
    %199 = vmatprep.subr.mxu0 0.0
    %200 = vmatpush1.msra.mxu0 0.0
    %201 = vmatprep.subr.mxu0 0.0
    %202 = vmatpush1.msra.mxu0 0.0
    %203 = vmatprep.subr.mxu0 0.0
    %204 = vmatpush1.msra.mxu0 0.0
    %205 = vmatprep.subr.mxu0 0.0
    %206 = vmatpush1.msra.mxu0 0.0
    %207 = vmatprep.subr.mxu0 0.0
    %208 = vmatpush1.msra.mxu0 0.0
    %209 = vmatprep.subr.mxu0 0.0
    %210 = vmatpush1.msra.mxu0 0.0
    %211 = vmatprep.subr.mxu0 0.0
    %212 = vmatpush1.msra.mxu0 0.0
    %213 = vmatprep.subr.mxu0 0.0
    %214 = vmatpush1.msra.mxu0 0.0
    %215 = vmatprep.subr.mxu0 0.0
    %216 = vmatpush1.msra.mxu0 0.0
    %217 = vmatprep.subr.mxu0 0.0
    %218 = vmatpush1.msra.mxu0 0.0
    %219 = vmatprep.subr.mxu0 0.0
    %220 = vmatpush1.msra.mxu0 0.0
    %221 = vmatprep.subr.mxu0 0.0
    %222 = vmatpush1.msra.mxu0 0.0
    %223 = vmatprep.subr.mxu0 0.0
    %224 = vmatpush1.msra.mxu0 0.0
    %225 = vmatprep.subr.mxu0 0.0
    %226 = vmatpush1.msra.mxu0 0.0
    %227 = vmatprep.subr.mxu0 0.0
    %228 = vmatpush1.msra.mxu0 0.0
    %229 = vmatprep.mubr.f32.mxu0 0.0
    %230 = vmatmul.mubr.f32.gmra.mrb[0].mxu0 %v163
    %v231 = vpop.f32.mrb[0].mxu0
    %v232 = vadd.f32 0.0, %v231
    %v233 = vpop.f32.mrb[0].mxu0
    %234 = vdwg.mxu0
    %235 = vrot.lane.b32.xlu0 %v38, 64
    %v236 = vpop.permute.xlu0 %235
    %v238 = vmul.f32 %v232, %v236
    %240 = vrot.lane.b32.xlu0 %v238, 96
    %v241 = vpop.permute.xlu0 %240
    %vm243 = vcmask 1048320
    %244 = vst.msk [vmem:[#allocation7] sm:$0xff] %vm243, %v241
    %245 = vst.msk [vmem:[#allocation7 + $0x8] sm:$0xff] %vm43, %v241
    %v246 = vld [vmem:[#allocation5 + $0x8] sm:$0xff]
    %v247 = vld [vmem:[#allocation5 + $0x18] sm:$0xff]
    %v248 = vld [vmem:[#allocation5 + $0x28] sm:$0xff]
    %v249 = vld [vmem:[#allocation5 + $0x38] sm:$0xff]
    %254 = vrot.lane.b32.xlu0 %v246, 96
    %v255 = vpop.permute.xlu0 %254
    %256 = vrot.lane.b32.xlu0 %v247, 96
    %v257 = vpop.permute.xlu0 %256
    %258 = vrot.lane.b32.xlu0 %v248, 96
    %v259 = vpop.permute.xlu0 %258
    %260 = vrot.lane.b32.xlu0 %v249, 96
    %v261 = vpop.permute.xlu0 %260
    %v266 = vsel %vm43, %v236, 0
    %268 = vmatprep.subr.mxu0 0.0
    %269 = vmatpush1.msra.mxu0 %v255
    %270 = vmatprep.subr.mxu0 0.0
    %271 = vmatpush1.msra.mxu0 %v257
    %272 = vmatprep.subr.mxu0 0.0
    %273 = vmatpush1.msra.mxu0 %v259
    %274 = vmatprep.subr.mxu0 0.0
    %275 = vmatpush1.msra.mxu0 %v261
    %276 = vmatprep.subr.mxu0 0.0
    %277 = vmatpush1.msra.mxu0 0.0
    %278 = vmatprep.subr.mxu0 0.0
    %279 = vmatpush1.msra.mxu0 0.0
    %280 = vmatprep.subr.mxu0 0.0
    %281 = vmatpush1.msra.mxu0 0.0
    %282 = vmatprep.subr.mxu0 0.0
    %283 = vmatpush1.msra.mxu0 0.0
    %284 = vmatprep.subr.mxu0 0.0
    %285 = vmatpush1.msra.mxu0 0.0
    %286 = vmatprep.subr.mxu0 0.0
    %287 = vmatpush1.msra.mxu0 0.0
    %288 = vmatprep.subr.mxu0 0.0
    %289 = vmatpush1.msra.mxu0 0.0
    %290 = vmatprep.subr.mxu0 0.0
    %291 = vmatpush1.msra.mxu0 0.0
    %292 = vmatprep.subr.mxu0 0.0
    %293 = vmatpush1.msra.mxu0 0.0
    %294 = vmatprep.subr.mxu0 0.0
    %295 = vmatpush1.msra.mxu0 0.0
    %296 = vmatprep.subr.mxu0 0.0
    %297 = vmatpush1.msra.mxu0 0.0
    %298 = vmatprep.subr.mxu0 0.0
    %299 = vmatpush1.msra.mxu0 0.0
    %300 = vmatprep.subr.mxu0 0.0
    %301 = vmatpush1.msra.mxu0 0.0
    %302 = vmatprep.subr.mxu0 0.0
    %303 = vmatpush1.msra.mxu0 0.0
    %304 = vmatprep.subr.mxu0 0.0
    %305 = vmatpush1.msra.mxu0 0.0
    %306 = vmatprep.subr.mxu0 0.0
    %307 = vmatpush1.msra.mxu0 0.0
    %308 = vmatprep.subr.mxu0 0.0
    %309 = vmatpush1.msra.mxu0 0.0
    %310 = vmatprep.subr.mxu0 0.0
    %311 = vmatpush1.msra.mxu0 0.0
    %312 = vmatprep.subr.mxu0 0.0
    %313 = vmatpush1.msra.mxu0 0.0
    %314 = vmatprep.subr.mxu0 0.0
    %315 = vmatpush1.msra.mxu0 0.0
    %316 = vmatprep.subr.mxu0 0.0
    %317 = vmatpush1.msra.mxu0 0.0
    %318 = vmatprep.subr.mxu0 0.0
    %319 = vmatpush1.msra.mxu0 0.0
    %320 = vmatprep.subr.mxu0 0.0
    %321 = vmatpush1.msra.mxu0 0.0
    %322 = vmatprep.subr.mxu0 0.0
    %323 = vmatpush1.msra.mxu0 0.0
    %324 = vmatprep.subr.mxu0 0.0
    %325 = vmatpush1.msra.mxu0 0.0
    %326 = vmatprep.subr.mxu0 0.0
    %327 = vmatpush1.msra.mxu0 0.0
    %328 = vmatprep.subr.mxu0 0.0
    %329 = vmatpush1.msra.mxu0 0.0
    %330 = vmatprep.subr.mxu0 0.0
    %331 = vmatpush1.msra.mxu0 0.0
    %332 = vmatprep.mubr.f32.mxu0 0.0
    %333 = vmatmul.mubr.f32.gmra.mrb[0].mxu0 %v266
    %v334 = vpop.f32.mrb[0].mxu0
    %v335 = vadd.f32 0.0, %v334
    %v336 = vpop.f32.mrb[0].mxu0
    %337 = vdwg.mxu0
    %338 = vrot.lane.b32.xlu0 %v38, 32
    %v339 = vpop.permute.xlu0 %338
    %v341 = vmul.f32 %v335, %v339
    %343 = vrot.lane.b32.xlu0 %v341, 32
    %v344 = vpop.permute.xlu0 %343
    %vm346 = vcmask 523520
    %347 = vst.msk [vmem:[#allocation7 + $0x8] sm:$0xff] %vm346, %v344
    // Predicated region
    $region18: #{tpu_custom_call.1} parent=1 // pred_check
      _
    $region19: #{tpu_custom_call.1} parent=1 // pred_check_branch
      %349 = sbr.rel (0) target = $region21
    $region20: #{tpu_custom_call.1} parent=1 // pred_region
      %s351 = ssub.s32 256, 256
      %352 = vsyncadd [#allocation4], %s351
      %s354 = sshll.u32 [#allocation7], 4
      %s355 = int_to_ptr.vmem [resolvable:$true] %s354
      %357 = dma.vmem_to_hbm [thread:$0]  %s355, 256, %s2, [#allocation4]
    $region21: #{tpu_custom_call.1} parent=1 // pred_fallthru
      _
    // Predicated region
    $region22: #{tpu_custom_call.1} parent=1 // pred_check
      _
    $region23: #{tpu_custom_call.1} parent=1 // pred_check_branch
      %359 = sbr.rel (0) target = $region25
    $region24: #{tpu_custom_call.1} parent=1 // pred_region
      %360 = dma.done [#allocation4], 256
    $region25: #{tpu_custom_call.1} parent=1 // pred_fallthru
      _
    %361 = vsyncpa [#allocation3], 1
    %362 = vsyncpa [#allocation6], 1
    %363 = vsyncpa [#allocation4], 1

</llo_original>
